<compile_context>
chip_gen: v7x
topology: tpu7x:2x2x1
jax: 0.10.0
libtpu: 0.0.40
codegen_flags: <defaults>
</compile_context>

<pallas_src>
import functools

import jax
import jax.numpy as jnp
from jax.experimental import pallas as pl
from jax.experimental.pallas import tpu as pltpu


def _masked_ce_kernel(len_ref, logits_ref, target_ref, *rest, t_tile, with_mask):
    """One (batch, time-tile) block -> one f32 partial sum.

    len_ref   : (B,) int32 in SMEM (scalar-prefetched effective lengths; == T in mask path)
    logits_ref: (1, C, T_TILE) input dtype (f32/bf16); classes on sublanes, time on lanes
    target_ref: (1, 1, T_TILE) int32 class indices
    mask_ref  : (1, 1, T_TILE) f32 mask (only when with_mask)
    out_ref   : (1, 1, 1, 1)   f32 partial sum of masked losses for this block
    """
    if with_mask:
        mask_ref, out_ref = rest
    else:
        (out_ref,) = rest

    b = pl.program_id(0)
    t = pl.program_id(1)

    x = logits_ref[0].astype(jnp.float32)            # (C, T_TILE); upcast in-kernel
    tgt = target_ref[0]                              # (1, T_TILE)

    # numerically stable log-sum-exp over the class (sublane) axis, per time position
    m = jnp.max(x, axis=0, keepdims=True)            # (1, T_TILE)
    xm = x - m                                       # reused by exp and by the select
    sumexp = jnp.sum(jnp.exp(xm), axis=0, keepdims=True)

    # Target-class logit via compact one-hot compare (no dynamic gather on TPU).
    # iota is (C, 1) and broadcasts against the (1, T_TILE) targets.
    # NOTE: out-of-range / sentinel targets (e.g. -1 padding) make picked_m == 0 so the
    # loss becomes lse; this is only correct because such positions must be masked out.
    cls = jax.lax.broadcasted_iota(jnp.int32, (x.shape[0], 1), 0)              # (C, 1)
    picked_m = jnp.sum(jnp.where(cls == tgt, xm, 0.0), axis=0, keepdims=True)  # picked - m

    losses = jnp.log(sumexp) - picked_m              # (1, T_TILE) == lse - picked

    # In-kernel sequence mask.  Also guards the ragged last tile: lanes with
    # t_idx >= T (eff_len <= T) may hold unspecified OOB logits/targets, and the
    # `where` discards them safely (unlike a multiply, which would propagate NaN/Inf).
    t_idx = t * t_tile + jax.lax.broadcasted_iota(jnp.int32, (1, t_tile), 1)
    valid = t_idx < len_ref[b]
    if with_mask:
        contrib = jnp.where(valid, losses * mask_ref[0], 0.0)
    else:
        contrib = jnp.where(valid, losses, 0.0)

    # Cross-lane reduce (XLU slot) -> single f32 partial sum; negligible writeback.
    out_ref[0, 0] = jnp.sum(contrib, axis=1, keepdims=True)


def _vmem_capacity_bytes():
    """Physical VMEM of the local TPU generation; conservative (v7x-sized) fallback."""
    try:
        info = pltpu.get_tpu_info()
        cap = getattr(info, "vmem_capacity_bytes", None)
        if cap:
            return int(cap)
    except Exception:
        pass
    return 64 * 1024 * 1024


def _choose_time_tile(num_classes, logits_itemsize, t_len, vmem_capacity,
                      extra_stream_bytes=0):
    """Pick a lane-dense time tile sized to a generation-aware VMEM budget."""
    # Double-buffered pipeline streams per time position: logits + target (+ mask).
    stream_per_pos = 2 * (num_classes * logits_itemsize + 4 + extra_stream_bytes)
    # In-kernel f32 temporaries (upcast x, exp(xm), select) — not double-buffered,
    # but real Mosaic internal scratch, so budget for them explicitly.
    scratch_per_pos = 3 * num_classes * 4
    per_pos = stream_per_pos + scratch_per_pos

    if vmem_capacity >= 100 * 1024 * 1024:     # v5e / v6e: 128 MiB physical VMEM
        budget_bytes = 40 * 1024 * 1024
        t_cap = 8192
    else:                                      # v7x: 64 MiB physical VMEM
        budget_bytes = 12 * 1024 * 1024
        t_cap = 2048                           # throughput plateaus by ~512-1024 lanes

    t_tile = int(budget_bytes // per_pos)
    t_tile = max(128, min(t_tile, t_cap))
    t_tile -= t_tile % 128
    # no point tiling wider than the (lane-padded) time extent
    t_pad_min = ((t_len + 127) // 128) * 128
    return max(128, min(t_tile, t_pad_min))


def masked_cross_entropy_loss(logits, target, lengths=None, mask=None,
                              max_len=None, t_tile=None):
    """JAX/Pallas equivalent of MaskedCrossEntropyLoss.forward.

    logits : (B, C, T) float (f32 or bf16), classes on axis 1 (PyTorch N,C,* layout)
    target : (B, T) integer class indices
    lengths: (B,) int lengths, or `mask`: (B, T) / (B, T, 1) float mask
    Returns: scalar sum(ce * mask) / sum(mask)
    """
    if lengths is None and mask is None:
        raise RuntimeError("Should provide either lengths or mask")

    B, C, T = logits.shape
    tgt = target.reshape(B, T).astype(jnp.int32)[:, None, :]        # (B, 1, T)

    with_mask = mask is not None
    if with_mask:
        mask2d = mask.reshape(B, T).astype(jnp.float32)
        extra_inputs = (mask2d[:, None, :],)                        # (B, 1, T)
        extra_stream = 4
        eff_len = jnp.full((B,), T, dtype=jnp.int32)                # OOB-tail guard only
        denom = jnp.sum(mask2d)
    else:
        # PyTorch builds a (B, max_len) mask and expands it onto (B, T); that is only
        # well-defined when max_len == T, so clamp defensively (positions >= max_len
        # are masked out and excluded from the denominator).
        eff_max = T if max_len is None else min(int(max_len), T)
        eff_len = jnp.clip(jnp.asarray(lengths).astype(jnp.int32), 0, eff_max)   # (B,)
        extra_inputs = ()
        extra_stream = 0
        denom = jnp.sum(eff_len).astype(jnp.float32)                # == sum(mask)

    vmem_cap = _vmem_capacity_bytes()
    if t_tile is None:
        t_tile = _choose_time_tile(C, jnp.dtype(logits.dtype).itemsize, T,
                                   vmem_cap, extra_stream)
    t_tile = max(128, (int(t_tile) // 128) * 128)
    n_t = pl.cdiv(T, t_tile)

    # TODO(synk): for vocab-scale C where a double-buffered (C, t_tile) logits tile no
    # longer fits VMEM, add a trailing "arbitrary" class grid axis with running
    # m / sumexp / picked accumulators in (1, t_tile) VMEM scratch (online logsumexp).

    kernel = functools.partial(_masked_ce_kernel, t_tile=t_tile, with_mask=with_mask)

    in_specs = [
        pl.BlockSpec((1, C, t_tile), lambda b, t, lens: (b, 0, t)),   # logits (native layout)
        pl.BlockSpec((1, 1, t_tile), lambda b, t, lens: (b, 0, t)),   # targets
    ]
    if with_mask:
        in_specs.append(pl.BlockSpec((1, 1, t_tile), lambda b, t, lens: (b, 0, t)))

    vmem_limit = (64 * 1024 * 1024 if vmem_cap >= 100 * 1024 * 1024
                  else 32 * 1024 * 1024)

    # Output: one f32 partial sum per (batch, time-tile) grid step.  The trailing (1, 1)
    # dims exist so the block's last two dims equal the full array dims (TPU blocking
    # rule); each step stores 4 bytes, so writeback traffic is negligible and both grid
    # axes stay "parallel" for v7x two-TensorCore sharding.
    parts = pl.pallas_call(
        kernel,
        out_shape=jax.ShapeDtypeStruct((B, n_t, 1, 1), jnp.float32),
        grid_spec=pltpu.PrefetchScalarGridSpec(
            num_scalar_prefetch=1,                     # eff_len -> SMEM
            grid=(B, n_t),
            in_specs=in_specs,
            out_specs=pl.BlockSpec((1, 1, 1, 1), lambda b, t, lens: (b, t, 0, 0)),
        ),
        compiler_params=pltpu.CompilerParams(
            dimension_semantics=("parallel", "parallel"),
            vmem_limit_bytes=vmem_limit,
        ),
    )(eff_len, logits, tgt, *extra_inputs)

    # Tiny final (pairwise) reduction over B * n_t partial sums in plain XLA.
    # Division by zero (all-masked input) yields NaN, as PyTorch does.
    return jnp.sum(parts) / denom


def _reference(logits, target, lengths=None, mask=None, max_len=None):
    """Pure-JAX reference of the same math (for a sanity check)."""
    B, C, T = logits.shape
    if mask is None:
        if max_len is None:
            max_len = T
        mask = (jnp.arange(max_len)[None, :] < lengths[:, None]).astype(jnp.float32)
    mask = mask.reshape(B, T).astype(jnp.float32)
    logp = jax.nn.log_softmax(logits.astype(jnp.float32), axis=1)          # (B, C, T)
    picked = jnp.take_along_axis(logp, target[:, None, :], axis=1)[:, 0, :]
    losses = -picked                                                       # (B, T)
    return jnp.sum(losses * mask) / jnp.sum(mask)


if __name__ == "__main__":
    key = jax.random.PRNGKey(0)
    k1, k2, k3, k4, k5, k6, k7 = jax.random.split(key, 7)

    # Case 1: small shapes in the module's (B, C, T) convention, lengths path.
    B, C, T = 2, 4, 16
    logits = jax.random.normal(k1, (B, C, T), dtype=jnp.float32)
    target = jax.random.randint(k2, (B, T), 0, C, dtype=jnp.int32)
    lengths = jnp.array([16, 9], dtype=jnp.int32)

    loss = jax.block_until_ready(masked_cross_entropy_loss(logits, target, lengths=lengths))
    ref = jax.block_until_ready(_reference(logits, target, lengths=lengths))
    assert jnp.allclose(loss, ref, rtol=1e-5, atol=1e-5), (loss, ref)

    # Case 2: bf16 logits, odd C, T not a tile multiple, multi-tile grid (forced t_tile).
    B2, C2, T2 = 3, 7, 300
    logits2 = jax.random.normal(k3, (B2, C2, T2), dtype=jnp.bfloat16)
    target2 = jax.random.randint(k4, (B2, T2), 0, C2, dtype=jnp.int32)
    lengths2 = jnp.array([300, 123, 57], dtype=jnp.int32)

    loss2 = jax.block_until_ready(
        masked_cross_entropy_loss(logits2, target2, lengths=lengths2, t_tile=128))
    ref2 = jax.block_until_ready(_reference(logits2, target2, lengths=lengths2))
    assert jnp.allclose(loss2, ref2, rtol=1e-5, atol=1e-5), (loss2, ref2)

    # Case 3: explicit user-provided mask path.
    B3, C3, T3 = 2, 5, 64
    logits3 = jax.random.normal(k5, (B3, C3, T3), dtype=jnp.float32)
    target3 = jax.random.randint(k6, (B3, T3), 0, C3, dtype=jnp.int32)
    mask3 = jax.random.bernoulli(k7, 0.6, (B3, T3)).astype(jnp.float32)

    loss3 = jax.block_until_ready(masked_cross_entropy_loss(logits3, target3, mask=mask3))
    ref3 = jax.block_until_ready(_reference(logits3, target3, mask=mask3))
    assert jnp.allclose(loss3, ref3, rtol=1e-5, atol=1e-5), (loss3, ref3)

    print("KERNEL_OK")
</pallas_src>

<mosaic_0001>
module attributes {stable_mosaic.version = 11 : i64} {
  func.func @_masked_ce_kernel(%arg0: i32, %arg1: i32, %arg2: memref<2xi32, #tpu.memory_space<smem>>, %arg3: memref<1x4x128xf32, #tpu.memory_space<vmem>>, %arg4: memref<1x1x128xi32, #tpu.memory_space<vmem>>, %arg5: memref<1x1x1x1xf32, #tpu.memory_space<vmem>>) attributes {dimension_semantics = [#tpu.dimension_semantics<parallel>, #tpu.dimension_semantics<parallel>], iteration_bounds = array<i64: 2, 1>, scalar_prefetch = 1 : i64, scratch_operands = 0 : i64, tpu.core_type = #tpu.core_type<tc>, window_params = [{transform_indices = @transform_0, window_bounds = array<i64: 1, 4, 128>}, {transform_indices = @transform_1, window_bounds = array<i64: 1, 1, 128>}, {transform_indices = @transform_2, window_bounds = array<i64: 1, 1, 1, 1>}]} {
    %c0 = arith.constant 0 : index
    %c0_0 = arith.constant 0 : index
    %c0_1 = arith.constant 0 : index
    %0 = vector.load %arg3[%c0, %c0_0, %c0_1] : memref<1x4x128xf32, #tpu.memory_space<vmem>>, vector<1x4x128xf32>
    %1 = vector.shape_cast %0 : vector<1x4x128xf32> to vector<4x128xf32>
    %c0_2 = arith.constant 0 : index
    %c0_3 = arith.constant 0 : index
    %c0_4 = arith.constant 0 : index
    %2 = vector.load %arg4[%c0_2, %c0_3, %c0_4] : memref<1x1x128xi32, #tpu.memory_space<vmem>>, vector<1x1x128xi32>
    %3 = vector.shape_cast %2 : vector<1x1x128xi32> to vector<1x128xi32>
    %cst = arith.constant dense<0xFF800000> : vector<128xf32>
    %4 = vector.multi_reduction <maximumf>, %1, %cst [0] : vector<4x128xf32> to vector<128xf32>
    %5 = vector.shape_cast %4 : vector<128xf32> to vector<1x128xf32>
    %6 = vector.broadcast %5 : vector<1x128xf32> to vector<4x128xf32>
    %7 = arith.subf %1, %6 : vector<4x128xf32>
    %8 = math.exp %7 : vector<4x128xf32>
    %cst_5 = arith.constant dense<0.000000e+00> : vector<128xf32>
    %9 = vector.multi_reduction <add>, %8, %cst_5 [0] : vector<4x128xf32> to vector<128xf32>
    %10 = vector.shape_cast %9 : vector<128xf32> to vector<1x128xf32>
    %11 = tpu.iota {dimensions = array<i32: 0>} : vector<4x1xi32>
    %12 = vector.broadcast %11 : vector<4x1xi32> to vector<4x128xi32>
    %13 = vector.broadcast %3 : vector<1x128xi32> to vector<4x128xi32>
    %14 = arith.cmpi eq, %12, %13 : vector<4x128xi32>
    %cst_6 = arith.constant 0.000000e+00 : f32
    %15 = vector.broadcast %cst_6 : f32 to vector<4x128xf32>
    %16 = arith.select %14, %7, %15 : vector<4x128xi1>, vector<4x128xf32>
    %cst_7 = arith.constant dense<0.000000e+00> : vector<128xf32>
    %17 = vector.multi_reduction <add>, %16, %cst_7 [0] : vector<4x128xf32> to vector<128xf32>
    %18 = vector.shape_cast %17 : vector<128xf32> to vector<1x128xf32>
    %19 = math.log %10 : vector<1x128xf32>
    %20 = arith.subf %19, %18 : vector<1x128xf32>
    %c128_i32 = arith.constant 128 : i32
    %21 = arith.muli %arg1, %c128_i32 : i32
    %22 = tpu.iota {dimensions = array<i32: 1>} : vector<1x128xi32>
    %23 = vector.broadcast %21 : i32 to vector<1x128xi32>
    %24 = arith.addi %23, %22 : vector<1x128xi32>
    %25 = arith.index_cast %arg0 : i32 to index
    %26 = memref.load %arg2[%25] : memref<2xi32, #tpu.memory_space<smem>>
    %27 = vector.broadcast %26 : i32 to vector<1x128xi32>
    %28 = arith.cmpi slt, %24, %27 : vector<1x128xi32>
    %cst_8 = arith.constant 0.000000e+00 : f32
    %29 = vector.broadcast %cst_8 : f32 to vector<1x128xf32>
    %30 = arith.select %28, %20, %29 : vector<1x128xi1>, vector<1x128xf32>
    %cst_9 = arith.constant dense<0.000000e+00> : vector<1xf32>
    %31 = vector.multi_reduction <add>, %30, %cst_9 [1] : vector<1x128xf32> to vector<1xf32>
    %32 = vector.shape_cast %31 : vector<1xf32> to vector<1x1xf32>
    %c0_10 = arith.constant 0 : index
    %c0_11 = arith.constant 0 : index
    %c0_12 = arith.constant 0 : index
    %c0_13 = arith.constant 0 : index
    %33 = vector.load %arg5[%c0_10, %c0_11, %c0_12, %c0_13] : memref<1x1x1x1xf32, #tpu.memory_space<vmem>>, vector<1x1x1x1xf32>
    %34 = vector.shape_cast %33 : vector<1x1x1x1xf32> to vector<1x1xf32>
    %35 = vector.shape_cast %32 : vector<1x1xf32> to vector<1x1x1x1xf32>
    tpu.vector_store %arg5[%c0_10, %c0_11, %c0_12, %c0_13], %35 {strides = array<i32>} : memref<1x1x1x1xf32, #tpu.memory_space<vmem>>, vector<1x1x1x1xf32>,
    return
  }
  func.func @transform_0(%arg0: i32, %arg1: i32, %arg2: memref<2xi32, #tpu.memory_space<smem>>) -> (i32, i32, i32) {
    %c0_i32 = arith.constant 0 : i32
    %c0_i32_0 = arith.constant 0 : i32
    return %arg0, %c0_i32, %arg1 : i32, i32, i32
  }
  func.func @transform_1(%arg0: i32, %arg1: i32, %arg2: memref<2xi32, #tpu.memory_space<smem>>) -> (i32, i32, i32) {
    %c0_i32 = arith.constant 0 : i32
    %c0_i32_0 = arith.constant 0 : i32
    return %arg0, %c0_i32, %arg1 : i32, i32, i32
  }
  func.func @transform_2(%arg0: i32, %arg1: i32, %arg2: memref<2xi32, #tpu.memory_space<smem>>) -> (i32, i32, i32, i32) {
    %c0_i32 = arith.constant 0 : i32
    %c0_i32_0 = arith.constant 0 : i32
    %c0_i32_1 = arith.constant 0 : i32
    return %arg0, %arg1, %c0_i32, %c0_i32_0 : i32, i32, i32, i32
  }
}

</mosaic_0001>

<llo_original>
// kernel: tpu_custom_call.1
$region0: #{tpu_custom_call.1}
  #allocation0 [shape = 'u32[]', space=smem, size = 0x4, offset = 0x4, fixed_abs, tag = 'smem constant byte address 0x4 - core index']
  #allocation1 [shape = 'u32[144,128]{1,0:T(1,128)}', space=vmem, size = 0x12000, scoped, tag = 'internal scratch']
  #allocation2 [shape = 's32[1]{0}', space=sflag, size = 0x4, scoped, tag = 'scoped memory for tpu_custom_call.1']
  #allocation3 [shape = 'u8[512]{0}', space=smem, size = 0x200, scoped, tag = 'prefetched SMEM operand 0']
  %s0 = inlined_call_operand.hbm [shape: s32[2], index: 0, kind: input, shape index: {}]
  %s1 = inlined_call_operand.hbm [shape: f32[2,4,16], index: 1, kind: input, shape index: {}]
  %s2 = inlined_call_operand.vmem [shape: s32[2,1,16], index: 2, kind: input, shape index: {}]
  %s3 = inlined_call_operand.vmem [shape: f32[2,1,1,1], index: 3, kind: output, shape index: {}]
  %s4 = sld [smem:[#allocation0]]
  $region45: #{tpu_custom_call.1} parent=0
    _
  %s6 = ssub.s32 1, %s4
  %s7 = scalar_select 0, %s6, %s4
  %9 = dma.hbm_to_smem %s0, 16, [#allocation3], [#allocation2]
  %10 = dma.done [#allocation2], 16
  %11 = sfence
  $region1: #{tpu_custom_call.1} parent=0
    #allocation4 [shape = 'u8[4096]{0}', space=vmem, size = 0x1000, scoped, tag = 'input window, operand 1']
    #allocation5 [shape = 's32[2]{0}', space=sflag, size = 0x8, scoped, tag = 'scoped memory for tpu_custom_call.1']
    %12 = vsyncpa [#allocation5], 0
    %s13 = scalar_lea.sflag [#allocation5], 1
    %14 = vsyncpa %s13, 0
    loop: start=0, step=1, limit=4
    $region2: #{tpu_custom_call.1} parent=1 // loop_pre_header
      _
    $region3: #{tpu_custom_call.1} parent=1 // loop_header
      %s16 = sphi 0, %s20
      %p17 = scmp.ge.s32.totalorder %s16, 4
      %s23 = sphi 0, %s35
      %s24 = sphi 0, %s31
      %s25 = sphi 0, %s23
      %s26 = sphi 0, %s24
      %s27 = sphi 0, %s25
      %s28 = sphi 0, %s26
      %s40 = sphi 0, %s42
      %s43 = sphi 0, %s40
      %s44 = sphi 0, %s43
      %s60 = sphi 0, %s44
      %s68 = sphi 0, %s70
      %s71 = sphi 0, %s68
      %s72 = sphi 0, %s71
      %s88 = sphi 0, %s72
      %s96 = sphi 0, %s98
      %s99 = sphi 0, %s96
      %s100 = sphi 0, %s99
      %s116 = sphi 0, %s100
    $region4: #{tpu_custom_call.1} parent=1 // loop_header_branch
      %19 = sbr.rel (%p17) target = $region8
    $region5: #{tpu_custom_call.1} parent=1 // loop_body
      %s21 = ssub.s32 %s16, 1
      %s22 = ssub.s32 %s16, 2
      %s29 = sadd.s32 1, %s24
      %p30 = scmp.ge.s32.totalorder %s29, 1
      %s31 = scalar_select %p30, 0, %s29
      %s32 = sadd.s32 1, %s23
      %s33 = scalar_select %p30, %s32, %s23
      %p34 = scmp.ge.s32.totalorder %s33, 2
      %s35 = scalar_select %p34, 0, %s33
      %s36 = ssub.s32 %s23, %s35
      %s37 = ssub.s32 %s24, %s31
      %s38 = sor.u32 %s36, %s37
      %p39 = scmp.eq.s32.totalorder %s38, 0
      %s41 = sadd.s32 %s40, 1
      %s42 = scalar_select %p39, %s40, %s41
      %p45 = pneg %p39
      %p46 = scmp.eq.s32.totalorder %s16, 1
      %p47 = por %p45, %p46
      %p48 = scmp.ne.s32.totalorder %s40, %s43
      %p49 = scmp.eq.s32.totalorder %s16, 0
      %p50 = por %p48, %p49
      %p51 = scmp.ne.s32.totalorder %s40, %s43
      %p52 = scmp.eq.s32.totalorder %s21, 1
      %p53 = por %p51, %p52
      %p54 = scmp.ne.s32.totalorder %s43, %s44
      %p55 = scmp.eq.s32.totalorder %s21, 0
      %p56 = por %p54, %p55
      %p57 = scmp.ne.s32.totalorder %s43, %s44
      %p58 = scmp.eq.s32.totalorder %s22, 1
      %p59 = por %p57, %p58
      %p61 = scmp.ne.s32.totalorder %s44, %s60
      %p62 = scmp.eq.s32.totalorder %s22, 0
      %p63 = por %p61, %p62
      %s64 = ssub.s32 %s23, %s35
      %s65 = ssub.s32 %s24, %s31
      %s66 = sor.u32 %s64, %s65
      %p67 = scmp.eq.s32.totalorder %s66, 0
      %s69 = sadd.s32 %s68, 1
      %s70 = scalar_select %p67, %s68, %s69
      %p73 = pneg %p67
      %p74 = scmp.eq.s32.totalorder %s16, 1
      %p75 = por %p73, %p74
      %p76 = scmp.ne.s32.totalorder %s68, %s71
      %p77 = scmp.eq.s32.totalorder %s16, 0
      %p78 = por %p76, %p77
      %p79 = scmp.ne.s32.totalorder %s68, %s71
      %p80 = scmp.eq.s32.totalorder %s21, 1
      %p81 = por %p79, %p80
      %p82 = scmp.ne.s32.totalorder %s71, %s72
      %p83 = scmp.eq.s32.totalorder %s21, 0
      %p84 = por %p82, %p83
      %p85 = scmp.ne.s32.totalorder %s71, %s72
      %p86 = scmp.eq.s32.totalorder %s22, 1
      %p87 = por %p85, %p86
      %p89 = scmp.ne.s32.totalorder %s72, %s88
      %p90 = scmp.eq.s32.totalorder %s22, 0
      %p91 = por %p89, %p90
      %s92 = ssub.s32 %s23, %s35
      %s93 = ssub.s32 %s24, %s31
      %s94 = sor.u32 %s92, %s93
      %p95 = scmp.eq.s32.totalorder %s94, 0
      %s97 = sadd.s32 %s96, 1
      %s98 = scalar_select %p95, %s96, %s97
      %p101 = pneg %p95
      %p102 = scmp.eq.s32.totalorder %s16, 1
      %p103 = por %p101, %p102
      %p104 = scmp.ne.s32.totalorder %s96, %s99
      %p105 = scmp.eq.s32.totalorder %s16, 0
      %p106 = por %p104, %p105
      %p107 = scmp.ne.s32.totalorder %s96, %s99
      %p108 = scmp.eq.s32.totalorder %s21, 1
      %p109 = por %p107, %p108
      %p110 = scmp.ne.s32.totalorder %s99, %s100
      %p111 = scmp.eq.s32.totalorder %s21, 0
      %p112 = por %p110, %p111
      %p113 = scmp.ne.s32.totalorder %s99, %s100
      %p114 = scmp.eq.s32.totalorder %s22, 1
      %p115 = por %p113, %p114
      %p117 = scmp.ne.s32.totalorder %s100, %s116
      %p118 = scmp.eq.s32.totalorder %s22, 0
      %p119 = por %p117, %p118
      %p120 = scmp.le.s32.totalorder 1, %s16
      %p121 = scmp.lt.s32.totalorder %s16, 3
      %p122 = pnand %p120, %p121
      %p123 = pneg %p122
      // Predicated region
      $region9: #{tpu_custom_call.1} parent=5 // pred_check
        _
      $region10: #{tpu_custom_call.1} parent=5 // pred_check_branch
        %125 = sbr.rel (%p122) target = $region12
      $region11: #{tpu_custom_call.1} parent=5 // pred_region
        %s126 = ssub.s32 %s16, 1
      $region12: #{tpu_custom_call.1} parent=5 // pred_fallthru
        _
      %p127 = scmp.lt.s32.totalorder %s16, 2
      // Predicated region
      $region13: #{tpu_custom_call.1} parent=5 // pred_check
        %p128 = pneg %p127
      $region14: #{tpu_custom_call.1} parent=5 // pred_check_branch
        %130 = sbr.rel (%p128) target = $region16
      $region15: #{tpu_custom_call.1} parent=5 // pred_region
        // Predicated region
        $region17: #{tpu_custom_call.1} parent=15 // pred_check
          %p131 = pneg %p50
        $region18: #{tpu_custom_call.1} parent=15 // pred_check_branch
          %133 = sbr.rel (%p131) target = $region20
        $region19: #{tpu_custom_call.1} parent=15 // pred_region
          %s134 = sand.u32 %s40, 1
          %s135 = scalar_lea.sflag [#allocation5], %s134
          %s136 = sand.u32 %s40, 1
          %s137 = smul.addr %s136, 4
          %s138 = scalar_lea.vmem [#allocation4], %s137
          %s140 = ssub.s32 64, 64
          %141 = vsyncadd %s135, %s140
          %s142 = sadd.s32 %s24, %s23
          %s143 = smul.addr %s142, 64
          %s144 = scalar_lea.hbm %s1, %s143
          %s146 = sshll.u32 %s138, 4
          %s147 = int_to_ptr.vmem [resolvable:$true] %s146
          %149 = dma.hbm_to_vmem [thread:$0]  %s144, 64, %s147, %s135
        $region20: #{tpu_custom_call.1} parent=15 // pred_fallthru
          _
        // Predicated region
        $region21: #{tpu_custom_call.1} parent=15 // pred_check
          %p150 = pneg %p78
        $region22: #{tpu_custom_call.1} parent=15 // pred_check_branch
          %152 = sbr.rel (%p150) target = $region24
        $region23: #{tpu_custom_call.1} parent=15 // pred_region
          %p153 = scmp.lt.s32.totalorder %s23, 1
          %s154 = scalar_select %p153, %s23, 1
          %p155 = scmp.lt.s32.totalorder %s24, 0
          %s156 = scalar_select %p155, %s24, 0
          %s157 = sadd.s32 %s156, %s154
          %s158 = scalar_lea.vmem %s2, %s157
        $region24: #{tpu_custom_call.1} parent=15 // pred_fallthru
          _
      $region16: #{tpu_custom_call.1} parent=5 // pred_fallthru
        _
      %p159 = scmp.le.s32.totalorder 1, %s16
      %p160 = scmp.lt.s32.totalorder %s16, 3
      %p161 = pnand %p159, %p160
      %p162 = pneg %p161
      // Predicated region
      $region25: #{tpu_custom_call.1} parent=5 // pred_check
        _
      $region26: #{tpu_custom_call.1} parent=5 // pred_check_branch
        %164 = sbr.rel (%p161) target = $region28
      $region27: #{tpu_custom_call.1} parent=5 // pred_region
        %s165 = ssub.s32 %s16, 1
        %s166 = sand.u32 %s43, 1
        %s167 = scalar_lea.sflag [#allocation5], %s166
        %s168 = sand.u32 %s43, 1
        %s169 = smul.addr %s168, 4
        %s170 = scalar_lea.vmem [#allocation4], %s169
        // Predicated region
        $region29: #{tpu_custom_call.1} parent=27 // pred_check
          %p171 = pneg %p56
        $region30: #{tpu_custom_call.1} parent=27 // pred_check_branch
          %173 = sbr.rel (%p171) target = $region32
        $region31: #{tpu_custom_call.1} parent=27 // pred_region
          %174 = dma.done %s167, 64
        $region32: #{tpu_custom_call.1} parent=27 // pred_fallthru
          _
        %s175 = sand.u32 %s43, 1
        %s176 = scalar_lea.sflag [#allocation5], %s175
        %s177 = sand.u32 %s43, 1
        %s178 = smul.addr %s177, 4
        %s179 = scalar_lea.vmem [#allocation4], %s178
        %p180 = pneg %p56
        %p181 = pneg %p53
        %p182 = scmp.lt.s32.totalorder %s25, 1
        %s183 = scalar_select %p182, %s25, 1
        %p184 = scmp.lt.s32.totalorder %s26, 0
        %s185 = scalar_select %p184, %s26, 0
        %s186 = sadd.s32 %s185, %s183
        %s187 = scalar_lea.vmem %s2, %s186
        %p188 = pneg %p84
        %p189 = pneg %p81
        %p190 = pneg %p112
        %p191 = pneg %p109
        %p192 = scmp.lt.s32.totalorder %s25, 1
        %s193 = scalar_select %p192, %s25, 1
        %p194 = scmp.lt.s32.totalorder %s26, 0
        %s195 = scalar_select %p194, %s26, 0
        %s196 = sadd.s32 %s195, %s193
        %s197 = scalar_lea.vmem %s3, %s196
        %p198 = scmp.lt.s32.totalorder %s25, 1
        %s199 = scalar_select %p198, %s25, 1
        %p200 = scmp.lt.s32.totalorder %s26, 0
        %s201 = scalar_select %p200, %s26, 0
        %s202 = sadd.s32 %s201, %s199
        %s203 = scalar_lea.vmem %s2, %s202
        %p204 = scmp.lt.s32.totalorder %s25, 1
        %s205 = scalar_select %p204, %s25, 1
        %p206 = scmp.lt.s32.totalorder %s26, 0
        %s207 = scalar_select %p206, %s26, 0
        %s208 = sadd.s32 %s207, %s205
        %s209 = scalar_lea.vmem %s3, %s208
        %v210 = vld [vmem:[%s170] sm:$0xf]
        %v211 = vld [vmem:[%s203] sm:$0x1]
        %vm212 = vcmask 1043456
        %v213 = vsel %vm212, %v210, -inf
        %v214 = vrot.slane %v213, 4
        %v215 = vmax.f32 %v213, %v214
        %v216 = vrot.slane %v215, 2
        %v217 = vmax.f32 %v215, %v216
        %v218 = vrot.slane %v217, 1
        %v219 = vmax.f32 %v217, %v218
        %v220 = vsub.f32 %v210, %v219
        %v221 = vmul.f32 %v220, 1.442695
        %v222 = vpow.pop %v221
        %v223 = vsel %vm212, %v222, 0.0
        %v224 = vrot.slane %v223, 4
        %v225 = vadd.f32 %v223, %v224
        %v226 = vrot.slane %v225, 2
        %v227 = vadd.f32 %v225, %v226
        %v228 = vrot.slane %v227, 1
        %v229 = vadd.f32 %v227, %v228
        %v230 = vlaneseq
        %v231 = vshrl.u32 %v230, 7
        %v232 = vlaneseq
        %v233 = vshrl.u32 %v232, 7
        %v234 = vsub.s32 0, %v233
        %v235 = vrot.slane %v211, %v234
        %vm236 = vcmp.eq.s32.totalorder %v231, %v235
        %v237 = vsel %vm236, %v220, 0.0
        %v238 = vsel %vm212, %v237, 0.0
        %v239 = vrot.slane %v238, 4
        %v240 = vadd.f32 %v238, %v239
        %v241 = vrot.slane %v240, 2
        %v242 = vadd.f32 %v240, %v241
        %v243 = vrot.slane %v242, 1
        %v244 = vadd.f32 %v242, %v243
        %v245 = vlog2.pop %v229
        %v246 = vmul.f32 %v245, 0.6931472
        %v247 = vsub.f32 %v246, %v244
        %s248 = smul.u32 %s26, 128
        %v249 = vlaneseq
        %v250 = vand.u32 %v249, 127
        %v251 = vstv %s248
        %v252 = vadd.s32 %v251, %v250
        %s253 = sld [smem:[#allocation3 + %s25]]
        %v254 = vstv %s253
        %vm255 = vcmp.lt.s32.totalorder %v252, %v254
        %v256 = vsel %vm255, %v247, 0.0
        %257 = vadd.xlane.f32.xlu0 %v256
        %v258 = vpop.xlane.xlu0 %257
        %vm259 = vcmask 0
        %260 = vst.msk [vmem:[%s209] sm:$0x1] %vm259, %v258
        %p261 = scmp.lt.s32.totalorder %s25, 1
        %s262 = scalar_select %p261, %s25, 1
        %p263 = scmp.lt.s32.totalorder %s26, 0
        %s264 = scalar_select %p263, %s26, 0
        %s265 = sadd.s32 %s264, %s262
        %s266 = scalar_lea.vmem %s3, %s265
        // Predicated region
        $region33: #{tpu_custom_call.1} parent=27 // pred_check
          %p267 = pneg %p109
        $region34: #{tpu_custom_call.1} parent=27 // pred_check_branch
          %269 = sbr.rel (%p267) target = $region36
        $region35: #{tpu_custom_call.1} parent=27 // pred_region
          _
        $region36: #{tpu_custom_call.1} parent=27 // pred_fallthru
          _
      $region28: #{tpu_custom_call.1} parent=5 // pred_fallthru
        _
      %p270 = scmp.le.s32.totalorder 2, %s16
      // Predicated region
      $region37: #{tpu_custom_call.1} parent=5 // pred_check
        %p271 = pneg %p270
      $region38: #{tpu_custom_call.1} parent=5 // pred_check_branch
        %273 = sbr.rel (%p271) target = $region40
      $region39: #{tpu_custom_call.1} parent=5 // pred_region
        %s274 = ssub.s32 %s16, 2
        // Predicated region
        $region41: #{tpu_custom_call.1} parent=39 // pred_check
          %p275 = pneg %p115
        $region42: #{tpu_custom_call.1} parent=39 // pred_check_branch
          %277 = sbr.rel (%p275) target = $region44
        $region43: #{tpu_custom_call.1} parent=39 // pred_region
          %p278 = scmp.lt.s32.totalorder %s27, 1
          %s279 = scalar_select %p278, %s27, 1
          %p280 = scmp.lt.s32.totalorder %s28, 0
          %s281 = scalar_select %p280, %s28, 0
          %s282 = sadd.s32 %s281, %s279
          %s283 = scalar_lea.vmem %s3, %s282
        $region44: #{tpu_custom_call.1} parent=39 // pred_fallthru
          _
      $region40: #{tpu_custom_call.1} parent=5 // pred_fallthru
        _
    $region6: #{tpu_custom_call.1} parent=1 // loop_footer
      %s20 = sadd.s32 1, %s16
    $region7: #{tpu_custom_call.1} parent=1 // loop_footer_branch
      %15 = sbr.rel target = $region3
    $region8: #{tpu_custom_call.1} parent=1 // loop_exit
      _
    %284 = vsyncpa [#allocation5], 1
    %s285 = scalar_lea.sflag [#allocation5], 1
    %286 = vsyncpa %s285, 1

</llo_original>
